<compile_context>
chip_gen: v5e
topology: v5e:2x2
jax: 0.10.0
libtpu: 0.0.40
codegen_flags: <defaults>
</compile_context>

<pallas_src>
import math

import jax
import jax.numpy as jnp
from jax.experimental import pallas as pl
from jax.experimental.pallas import tpu as pltpu


# ----------------------------------------------------------------------------
# Fused kernel: G (2-layer MLP) + batched D (2-layer MLP on [xreal; xfake]).
# Everything (weights ~260 KB bf16 + activations ~few tens of KB) fits in VMEM,
# so we use full-array blocks (no grid) and do all matmuls in one kernel body.
# ----------------------------------------------------------------------------
def _gan_fused_kernel(xreal_ref, latent_ref,
                      gw1_ref, gb1_ref, gw2_ref, gb2_ref,
                      dw1_ref, db1_ref, dw2_ref, db2_ref,
                      y_ref, xfake_ref):
    cdt = gw1_ref.dtype  # MXU operand dtype (bf16 on v6e/v7x, f32 on v5e)

    # ---- Generator: latent -> ReLU -> tanh image (flat) ----
    h = jnp.dot(latent_ref[...], gw1_ref[...],
                preferred_element_type=jnp.float32)
    h = jnp.maximum(h + gb1_ref[...], 0.0)
    xf = jnp.dot(h.astype(cdt), gw2_ref[...],
                 preferred_element_type=jnp.float32)
    xf = jnp.tanh(xf + gb2_ref[...])
    xfake_ref[...] = xf

    # ---- Stack real & fake rows in vregs (no VMEM scratch round-trip) so the
    #      discriminator weights are applied with one batched matmul. ----
    dx = jnp.concatenate([xreal_ref[...], xf.astype(cdt)], axis=0)  # (2Bp, F)

    # ---- Discriminator layer 1: LeakyReLU(0.2) ----
    h2 = jnp.dot(dx, dw1_ref[...], preferred_element_type=jnp.float32)
    h2 = h2 + db1_ref[...]
    h2 = jnp.where(h2 > 0.0, h2, 0.2 * h2)

    # ---- Discriminator layer 2 (hidden -> 1): VPU mul + XLU reduce instead of
    #      a 128-padded MXU matmul (N=1 MXU op is pure push/pop latency). ----
    logits = jnp.sum(h2 * dw2_ref[...], axis=-1, keepdims=True) + db2_ref[...]
    # sigmoid: exp on EUP, approx reciprocal also on EUP (divide off the VPU).
    y = pl.reciprocal(1.0 + jnp.exp(-logits), approx=True)
    y = jnp.minimum(y, 1.0)  # guard the ~2^-12 approx error at saturation
    # Lane-dense (2Bp, 128) output slab -> unmasked vst; column 0 sliced later.
    y_ref[...] = jnp.broadcast_to(y, y_ref.shape)


def gan_fused_forward(xreal_pad, latent_pad, p):
    """One pallas_call computing (y_pad, xfake_pad) on sublane-padded batches."""
    Bp, F = xreal_pad.shape
    L = latent_pad.shape[1]
    Hd = p["g_w1"].shape[1]
    NPAD = 128  # lane-dense discriminator output slab width

    operands = (xreal_pad, latent_pad,
                p["g_w1"], p["g_b1"], p["g_w2"], p["g_b2"],
                p["d_w1"], p["d_b1"], p["d_w2r"], p["d_b2"])

    flops = 2 * (Bp * L * Hd + Bp * Hd * F + 2 * Bp * F * Hd) + 4 * Bp * Hd
    transcendentals = Bp * F + 2 * Bp  # tanh + sigmoid exp/recip
    bytes_in = sum(int(a.size) * a.dtype.itemsize for a in operands)
    bytes_out = (2 * Bp * NPAD + Bp * F) * 4

    vmem = pl.BlockSpec(memory_space=pltpu.MemorySpace.VMEM)
    y_pad, xfake_pad = pl.pallas_call(
        _gan_fused_kernel,
        out_shape=(jax.ShapeDtypeStruct((2 * Bp, NPAD), jnp.float32),
                   jax.ShapeDtypeStruct((Bp, F), jnp.float32)),
        in_specs=[vmem] * len(operands),
        out_specs=(vmem, vmem),
        cost_estimate=pl.CostEstimate(flops=flops,
                                      transcendentals=transcendentals,
                                      bytes_accessed=bytes_in + bytes_out),
    )(*operands)
    return y_pad, xfake_pad


# ----------------------------------------------------------------------------
# Parameter init (xavier_uniform weights, zero biases) + kernel-layout prep
# ----------------------------------------------------------------------------
def xavier_uniform(key, fan_in, fan_out):
    bound = math.sqrt(6.0 / (fan_in + fan_out))
    return jax.random.uniform(
        key, (fan_in, fan_out), dtype=jnp.float32, minval=-bound, maxval=bound
    )


def init_params(key, latent_dim, hidden, img_feat):
    k1, k2, k3, k4 = jax.random.split(key, 4)
    return {
        "g_w1": xavier_uniform(k1, latent_dim, hidden),
        "g_b1": jnp.zeros((hidden,), jnp.float32),
        "g_w2": xavier_uniform(k2, hidden, img_feat),
        "g_b2": jnp.zeros((img_feat,), jnp.float32),
        "d_w1": xavier_uniform(k3, img_feat, hidden),
        "d_b1": jnp.zeros((hidden,), jnp.float32),
        "d_w2": xavier_uniform(k4, hidden, 1),
        "d_b2": jnp.zeros((1,), jnp.float32),
    }


def prep_kernel_params(params, compute_dtype=jnp.bfloat16):
    """Cast MXU weights to compute_dtype; biases + (1,hidden) D head stay f32."""
    return {
        "g_w1": params["g_w1"].astype(compute_dtype),
        "g_b1": params["g_b1"].reshape(1, -1),
        "g_w2": params["g_w2"].astype(compute_dtype),
        "g_b2": params["g_b2"].reshape(1, -1),
        "d_w1": params["d_w1"].astype(compute_dtype),
        "d_b1": params["d_b1"].reshape(1, -1),
        "d_w2r": params["d_w2"].reshape(1, -1).astype(jnp.float32),
        "d_b2": params["d_b2"].reshape(1, 1),
    }


# ----------------------------------------------------------------------------
# GANModel forward (hot path jitted; logging hooks built lazily outside)
# ----------------------------------------------------------------------------
def format_images(images):
    # images: (B, C, H, W) -> (1, C, g*H, g*W) grid, g = floor(sqrt(B))
    b, c, h, w = images.shape
    g = int(math.floor(math.sqrt(b)))
    images = images[: g * g]
    images = images.reshape(g, g, c, h, w)
    images = jnp.transpose(images, (0, 3, 1, 4, 2))
    images = images.reshape(1, g * h, g * w, c)
    return jnp.transpose(images, (0, 3, 1, 2))


def _round_up(n, m):
    return ((n + m - 1) // m) * m


def make_gan_forward(latent_dim, compute_dtype=jnp.bfloat16):
    # 16-row padding packs full bf16 vregs along sublanes; 8 suffices for f32.
    row_pad = 16 if compute_dtype == jnp.bfloat16 else 8

    @jax.jit
    def fwd(kparams, xreal, key):
        B = xreal.shape[0]
        F = xreal.shape[1] * xreal.shape[2] * xreal.shape[3]
        Bp = _round_up(max(B, row_pad), row_pad)

        # Cast to the matmul operand dtype ONCE, in the wrapper (at rest),
        # and pad the batch (sublane) dim to full packing granularity.
        xreal_flat = xreal.reshape(B, -1).astype(compute_dtype)
        latent = jax.random.normal(key, (B, latent_dim), dtype=jnp.float32)

        xreal_pad = jnp.zeros((Bp, F), compute_dtype).at[:B].set(xreal_flat)
        latent_pad = jnp.zeros((Bp, latent_dim), compute_dtype).at[:B].set(
            latent.astype(compute_dtype))

        y_pad, xfake_pad = gan_fused_forward(xreal_pad, latent_pad, kparams)

        y_real = y_pad[:B, :1]            # real rows live at [0, B)
        y_fake = y_pad[Bp:Bp + B, :1]     # fake rows live at [Bp, Bp + B)
        xfake = xfake_pad[:B].reshape(xreal.shape)
        return y_real, y_fake, xfake

    return fwd


def build_state_hooks(xreal, xfake):
    # Pure-layout ops, only needed for logging -> kept out of the hot path.
    return {
        "xreal": xreal,
        "real_images": format_images(xreal),
        "xfake": xfake,
        "generated_images": format_images(xfake),
    }


# ----------------------------------------------------------------------------
if __name__ == "__main__":
    B, C, H, W = 2, 4, 16, 16
    latent_dim, hidden = 32, 64
    img_feat = C * H * W

    root = jax.random.PRNGKey(0)
    k_params, k_x, k_latent = jax.random.split(root, 3)

    params = init_params(k_params, latent_dim, hidden, img_feat)
    kparams = prep_kernel_params(params)           # bf16 weights (v6e/v7x)
    xreal = jax.random.normal(k_x, (B, C, H, W), dtype=jnp.float32)

    gan_forward = make_gan_forward(latent_dim)
    y_real, y_fake, xfake = gan_forward(kparams, xreal, k_latent)
    jax.block_until_ready((y_real, y_fake, xfake))

    hooks = build_state_hooks(xreal, xfake)

    assert y_real.shape == (B, 1) and y_fake.shape == (B, 1)
    assert xfake.shape == (B, C, H, W)
    assert hooks["real_images"].shape == (1, C, H, W)       # gridsize 1 for B=2
    assert hooks["generated_images"].shape == (1, C, H, W)
    assert bool(jnp.all((y_real >= 0) & (y_real <= 1)))
    assert bool(jnp.all((y_fake >= 0) & (y_fake <= 1)))
    assert bool(jnp.all((xfake >= -1) & (xfake <= 1)))       # tanh range
    assert bool(jnp.all(jnp.isfinite(y_real) & jnp.isfinite(y_fake)))

    print("KERNEL_OK")
</pallas_src>

<mosaic_0001>
module attributes {stable_mosaic.version = 11 : i64} {
  func.func @_gan_fused_kernel(%arg0: memref<16x1024xbf16, #tpu.memory_space<vmem>>, %arg1: memref<16x32xbf16, #tpu.memory_space<vmem>>, %arg2: memref<32x64xbf16, #tpu.memory_space<vmem>>, %arg3: memref<1x64xf32, #tpu.memory_space<vmem>>, %arg4: memref<64x1024xbf16, #tpu.memory_space<vmem>>, %arg5: memref<1x1024xf32, #tpu.memory_space<vmem>>, %arg6: memref<1024x64xbf16, #tpu.memory_space<vmem>>, %arg7: memref<1x64xf32, #tpu.memory_space<vmem>>, %arg8: memref<1x64xf32, #tpu.memory_space<vmem>>, %arg9: memref<1x1xf32, #tpu.memory_space<vmem>>, %arg10: memref<32x128xf32, #tpu.memory_space<vmem>>, %arg11: memref<16x1024xf32, #tpu.memory_space<vmem>>) attributes {dimension_semantics = [], scalar_prefetch = 0 : i64, scratch_operands = 0 : i64, tpu.core_type = #tpu.core_type<tc>} {
    %c0 = arith.constant 0 : index
    %c0_0 = arith.constant 0 : index
    %0 = vector.load %arg1[%c0, %c0_0] : memref<16x32xbf16, #tpu.memory_space<vmem>>, vector<16x32xbf16>
    %c0_1 = arith.constant 0 : index
    %c0_2 = arith.constant 0 : index
    %1 = vector.load %arg2[%c0_1, %c0_2] : memref<32x64xbf16, #tpu.memory_space<vmem>>, vector<32x64xbf16>
    %cst = arith.constant dense<0.000000e+00> : vector<16x64xf32>
    %2 = tpu.matmul %0, %1, %cst {dimension_numbers = #tpu.dot_dimension_numbers<[1], [0], [0], [1], [0, 0, 1, 1], [], []>} : vector<16x32xbf16>, vector<32x64xbf16>, vector<16x64xf32> -> vector<16x64xf32>
    %c0_3 = arith.constant 0 : index
    %c0_4 = arith.constant 0 : index
    %3 = vector.load %arg3[%c0_3, %c0_4] : memref<1x64xf32, #tpu.memory_space<vmem>>, vector<1x64xf32>
    %4 = vector.broadcast %3 : vector<1x64xf32> to vector<16x64xf32>
    %5 = arith.addf %2, %4 : vector<16x64xf32>
    %cst_5 = arith.constant 0.000000e+00 : f32
    %6 = vector.broadcast %cst_5 : f32 to vector<16x64xf32>
    %7 = arith.maximumf %5, %6 : vector<16x64xf32>
    %8 = arith.truncf %7 : vector<16x64xf32> to vector<16x64xbf16>
    %c0_6 = arith.constant 0 : index
    %c0_7 = arith.constant 0 : index
    %9 = vector.load %arg4[%c0_6, %c0_7] : memref<64x1024xbf16, #tpu.memory_space<vmem>>, vector<64x1024xbf16>
    %cst_8 = arith.constant dense<0.000000e+00> : vector<16x1024xf32>
    %10 = tpu.matmul %8, %9, %cst_8 {dimension_numbers = #tpu.dot_dimension_numbers<[1], [0], [0], [1], [0, 0, 1, 1], [], []>} : vector<16x64xbf16>, vector<64x1024xbf16>, vector<16x1024xf32> -> vector<16x1024xf32>
    %c0_9 = arith.constant 0 : index
    %c0_10 = arith.constant 0 : index
    %11 = vector.load %arg5[%c0_9, %c0_10] : memref<1x1024xf32, #tpu.memory_space<vmem>>, vector<1x1024xf32>
    %12 = vector.broadcast %11 : vector<1x1024xf32> to vector<16x1024xf32>
    %13 = arith.addf %10, %12 : vector<16x1024xf32>
    %14 = math.tanh %13 : vector<16x1024xf32>
    %c0_11 = arith.constant 0 : index
    %c0_12 = arith.constant 0 : index
    %15 = vector.load %arg11[%c0_11, %c0_12] : memref<16x1024xf32, #tpu.memory_space<vmem>>, vector<16x1024xf32>
    tpu.vector_store %arg11[%c0_11, %c0_12], %14 {strides = array<i32>} : memref<16x1024xf32, #tpu.memory_space<vmem>>, vector<16x1024xf32>,
    %c0_13 = arith.constant 0 : index
    %c0_14 = arith.constant 0 : index
    %16 = vector.load %arg0[%c0_13, %c0_14] : memref<16x1024xbf16, #tpu.memory_space<vmem>>, vector<16x1024xbf16>
    %17 = arith.truncf %14 : vector<16x1024xf32> to vector<16x1024xbf16>
    %18 = tpu.concatenate %16, %17 in 0 : vector<16x1024xbf16>, vector<16x1024xbf16> -> vector<32x1024xbf16>
    %c0_15 = arith.constant 0 : index
    %c0_16 = arith.constant 0 : index
    %19 = vector.load %arg6[%c0_15, %c0_16] : memref<1024x64xbf16, #tpu.memory_space<vmem>>, vector<1024x64xbf16>
    %cst_17 = arith.constant dense<0.000000e+00> : vector<32x64xf32>
    %20 = tpu.matmul %18, %19, %cst_17 {dimension_numbers = #tpu.dot_dimension_numbers<[1], [0], [0], [1], [0, 0, 1, 1], [], []>} : vector<32x1024xbf16>, vector<1024x64xbf16>, vector<32x64xf32> -> vector<32x64xf32>
    %c0_18 = arith.constant 0 : index
    %c0_19 = arith.constant 0 : index
    %21 = vector.load %arg7[%c0_18, %c0_19] : memref<1x64xf32, #tpu.memory_space<vmem>>, vector<1x64xf32>
    %22 = vector.broadcast %21 : vector<1x64xf32> to vector<32x64xf32>
    %23 = arith.addf %20, %22 : vector<32x64xf32>
    %cst_20 = arith.constant 0.000000e+00 : f32
    %24 = vector.broadcast %cst_20 : f32 to vector<32x64xf32>
    %25 = arith.cmpf ogt, %23, %24 : vector<32x64xf32>
    %cst_21 = arith.constant 2.000000e-01 : f32
    %26 = vector.broadcast %cst_21 : f32 to vector<32x64xf32>
    %27 = arith.mulf %26, %23 : vector<32x64xf32>
    %28 = arith.select %25, %23, %27 : vector<32x64xi1>, vector<32x64xf32>
    %c0_22 = arith.constant 0 : index
    %c0_23 = arith.constant 0 : index
    %29 = vector.load %arg8[%c0_22, %c0_23] : memref<1x64xf32, #tpu.memory_space<vmem>>, vector<1x64xf32>
    %30 = vector.broadcast %29 : vector<1x64xf32> to vector<32x64xf32>
    %31 = arith.mulf %28, %30 : vector<32x64xf32>
    %cst_24 = arith.constant dense<0.000000e+00> : vector<32xf32>
    %32 = vector.multi_reduction <add>, %31, %cst_24 [1] : vector<32x64xf32> to vector<32xf32>
    %33 = vector.shape_cast %32 : vector<32xf32> to vector<32x1xf32>
    %c0_25 = arith.constant 0 : index
    %c0_26 = arith.constant 0 : index
    %34 = vector.load %arg9[%c0_25, %c0_26] : memref<1x1xf32, #tpu.memory_space<vmem>>, vector<1x1xf32>
    %35 = vector.broadcast %34 : vector<1x1xf32> to vector<32x1xf32>
    %36 = arith.addf %33, %35 : vector<32x1xf32>
    %cst_27 = arith.constant 0.000000e+00 : f32
    %37 = vector.broadcast %cst_27 : f32 to vector<32x1xf32>
    %38 = arith.subf %37, %36 : vector<32x1xf32>
    %39 = math.exp %38 : vector<32x1xf32>
    %cst_28 = arith.constant 1.000000e+00 : f32
    %40 = vector.broadcast %cst_28 : f32 to vector<32x1xf32>
    %41 = arith.addf %40, %39 : vector<32x1xf32>
    %42 = tpu.reciprocal %41 {approx = true} : vector<32x1xf32> -> vector<32x1xf32>
    %cst_29 = arith.constant 1.000000e+00 : f32
    %43 = vector.broadcast %cst_29 : f32 to vector<32x1xf32>
    %44 = arith.minimumf %42, %43 : vector<32x1xf32>
    %45 = vector.shape_cast %44 : vector<32x1xf32> to vector<32x1xf32>
    %46 = vector.broadcast %45 : vector<32x1xf32> to vector<32x128xf32>
    %c0_30 = arith.constant 0 : index
    %c0_31 = arith.constant 0 : index
    %47 = vector.load %arg10[%c0_30, %c0_31] : memref<32x128xf32, #tpu.memory_space<vmem>>, vector<32x128xf32>
    tpu.vector_store %arg10[%c0_30, %c0_31], %46 {strides = array<i32>} : memref<32x128xf32, #tpu.memory_space<vmem>>, vector<32x128xf32>,
    return
  }
}

</mosaic_0001>

<llo_original>
// kernel: fwd.1
$region0: #{fwd.1}
  #allocation0 [shape = 'u32[]', space=smem, size = 0x4, offset = 0x4, fixed_abs, tag = 'smem constant byte address 0x4 - core index']
  #allocation1 [shape = 'u32[72,128]{1,0:T(1,128)}', space=vmem, size = 0x9000, scoped, tag = 'internal scratch']
  #allocation2 [shape = 'f32[1,1]{1,0:T(1,128)S(1)}', space=vmem, size = 0x200, scoped, tag = 'scoped memory for fwd.1']
  %s0 = inlined_call_operand.vmem [shape: bf16[16,1024], index: 0, kind: input, shape index: {}]
  %s1 = inlined_call_operand.vmem [shape: bf16[16,32], index: 1, kind: input, shape index: {}]
  %s2 = inlined_call_operand.vmem [shape: bf16[32,64], index: 2, kind: input, shape index: {}]
  %s3 = inlined_call_operand.vmem [shape: f32[1,64], index: 3, kind: input, shape index: {}]
  %s4 = inlined_call_operand.vmem [shape: bf16[64,1024], index: 4, kind: input, shape index: {}]
  %s5 = inlined_call_operand.vmem [shape: f32[1,1024], index: 5, kind: input, shape index: {}]
  %s6 = inlined_call_operand.vmem [shape: bf16[1024,64], index: 6, kind: input, shape index: {}]
  %s7 = inlined_call_operand.vmem [shape: f32[1,64], index: 7, kind: input, shape index: {}]
  %s8 = inlined_call_operand.vmem [shape: f32[1,64], index: 8, kind: input, shape index: {}]
  %s9 = inlined_call_operand.<no memory space> [shape: f32[1,1], index: 9, kind: input, shape index: {}]
  %s10 = inlined_call_operand.vmem [shape: f32[32,128], index: 10, kind: output, shape index: {0}]
  %s11 = inlined_call_operand.vmem [shape: f32[16,1024], index: 11, kind: output, shape index: {1}]
  %12 = xla_tuple %s10, %s11
  %s13 = sld [smem:[#allocation0]]
  $region58: #{fwd.1} parent=0
    _
  %s15 = ssub.s32 1, %s13
  %s16 = scalar_select 0, %s15, %s13
  %v17 = vstv %s9
  %18 = vst [vmem:[#allocation2] sm:$0x1] %v17
  // Predicated region
  $region2: #{fwd.1} parent=0 // pred_check
    _
  $region3: #{fwd.1} parent=0 // pred_check_branch
    %20 = sbr.rel (0) target = $region5
  $region4: #{fwd.1} parent=0 // pred_region
    _
  $region5: #{fwd.1} parent=0 // pred_fallthru
    _
  // Predicated region
  $region6: #{fwd.1} parent=0 // pred_check
    _
  $region7: #{fwd.1} parent=0 // pred_check_branch
    %22 = sbr.rel (0) target = $region9
  $region8: #{fwd.1} parent=0 // pred_region
    _
  $region9: #{fwd.1} parent=0 // pred_fallthru
    _
  // Predicated region
  $region10: #{fwd.1} parent=0 // pred_check
    _
  $region11: #{fwd.1} parent=0 // pred_check_branch
    %24 = sbr.rel (0) target = $region13
  $region12: #{fwd.1} parent=0 // pred_region
    _
  $region13: #{fwd.1} parent=0 // pred_fallthru
    _
  // Predicated region
  $region14: #{fwd.1} parent=0 // pred_check
    _
  $region15: #{fwd.1} parent=0 // pred_check_branch
    %26 = sbr.rel (0) target = $region17
  $region16: #{fwd.1} parent=0 // pred_region
    _
  $region17: #{fwd.1} parent=0 // pred_fallthru
    _
  // Predicated region
  $region18: #{fwd.1} parent=0 // pred_check
    _
  $region19: #{fwd.1} parent=0 // pred_check_branch
    %28 = sbr.rel (0) target = $region21
  $region20: #{fwd.1} parent=0 // pred_region
    _
  $region21: #{fwd.1} parent=0 // pred_fallthru
    _
  // Predicated region
  $region22: #{fwd.1} parent=0 // pred_check
    _
  $region23: #{fwd.1} parent=0 // pred_check_branch
    %30 = sbr.rel (0) target = $region25
  $region24: #{fwd.1} parent=0 // pred_region
    _
  $region25: #{fwd.1} parent=0 // pred_fallthru
    _
  // Predicated region
  $region26: #{fwd.1} parent=0 // pred_check
    _
  $region27: #{fwd.1} parent=0 // pred_check_branch
    %32 = sbr.rel (0) target = $region29
  $region28: #{fwd.1} parent=0 // pred_region
    _
  $region29: #{fwd.1} parent=0 // pred_fallthru
    _
  // Predicated region
  $region30: #{fwd.1} parent=0 // pred_check
    _
  $region31: #{fwd.1} parent=0 // pred_check_branch
    %34 = sbr.rel (0) target = $region33
  $region32: #{fwd.1} parent=0 // pred_region
    _
  $region33: #{fwd.1} parent=0 // pred_fallthru
    _
  // Predicated region
  $region34: #{fwd.1} parent=0 // pred_check
    _
  $region35: #{fwd.1} parent=0 // pred_check_branch
    %36 = sbr.rel (0) target = $region37
  $region36: #{fwd.1} parent=0 // pred_region
    _
  $region37: #{fwd.1} parent=0 // pred_fallthru
    _
  // Predicated region
  $region38: #{fwd.1} parent=0 // pred_check
    _
  $region39: #{fwd.1} parent=0 // pred_check_branch
    %38 = sbr.rel (0) target = $region41
  $region40: #{fwd.1} parent=0 // pred_region
    _
  $region41: #{fwd.1} parent=0 // pred_fallthru
    _
  %v40 = vld [vmem:[%s1] sm:$0xf]
  %v41 = vld [vmem:[%s1 + $0x4] sm:$0xf]
  %v42 = vld [vmem:[%s2] sm:$0xf]
  %v43 = vld [vmem:[%s2 + $0x4] sm:$0xf]
  %v44 = vld [vmem:[%s2 + $0x8] sm:$0xf]
  %v45 = vld [vmem:[%s2 + $0xc] sm:$0xf]
  %v46 = vld [vmem:[%s3] sm:$0x1]
  %v48 = vperm.slane %v46, 0
  %v52 = vunpack.c.l.b16 %v40
  %v53 = vunpack.c.l.b16 %v41
  %v54 = vpack.c.b16 %v53, %v52
  %v59 = vunpack.c.l.b16 %v42
  %v60 = vunpack.c.l.b16 %v43
  %v61 = vunpack.c.l.b16 %v44
  %v62 = vunpack.c.l.b16 %v45
  %v63 = vpack.c.b16 %v60, %v59
  %v64 = vpack.c.b16 %v62, %v61
  %vm67 = vcmask 261120
  %v69 = vsel %vm67, %v54, 0
  %71 = vmatpush.bf16.msra.mxu0 0
  %72 = vmatpush.bf16.msra.mxu0 0
  %73 = vmatpush.bf16.msra.mxu0 0
  %74 = vmatpush.bf16.msra.mxu0 0
  %75 = vmatpush.bf16.msra.mxu0 0
  %76 = vmatpush.bf16.msra.mxu0 0
  %77 = vmatpush.bf16.msra.mxu0 %v64
  %78 = vmatpush.bf16.msra.mxu0 %v63
  %79 = vmatmul.bf16.gmra.mxu0 %v69
  %v80 = vpop.f32.mrf.mxu0
  %v81 = vadd.f32 %v48, %v80
  %v82 = vpop.f32.mrf.mxu0
  %v83 = vadd.f32 %v48, %v82
  %84 = vdwg.mxu0
  %v85 = vmax.f32 %v81, 0.0
  %v86 = vmax.f32 %v83, 0.0
  %v87 = vpack.c.bf16 %v86, %v85
  %v88 = vld [vmem:[%s4] sm:$0xff]
  %v89 = vld [vmem:[%s4 + $0x8] sm:$0xff]
  %v90 = vld [vmem:[%s4 + $0x10] sm:$0xff]
  %v91 = vld [vmem:[%s4 + $0x18] sm:$0xff]
  %v92 = vld [vmem:[%s4 + $0x20] sm:$0xff]
  %v93 = vld [vmem:[%s4 + $0x28] sm:$0xff]
  %v94 = vld [vmem:[%s4 + $0x30] sm:$0xff]
  %v95 = vld [vmem:[%s4 + $0x38] sm:$0xff]
  %v96 = vld [vmem:[%s4 + $0x40] sm:$0xff]
  %v97 = vld [vmem:[%s4 + $0x48] sm:$0xff]
  %v98 = vld [vmem:[%s4 + $0x50] sm:$0xff]
  %v99 = vld [vmem:[%s4 + $0x58] sm:$0xff]
  %v100 = vld [vmem:[%s4 + $0x60] sm:$0xff]
  %v101 = vld [vmem:[%s4 + $0x68] sm:$0xff]
  %v102 = vld [vmem:[%s4 + $0x70] sm:$0xff]
  %v103 = vld [vmem:[%s4 + $0x78] sm:$0xff]
  %v104 = vld [vmem:[%s4 + $0x80] sm:$0xff]
  %v105 = vld [vmem:[%s4 + $0x88] sm:$0xff]
  %v106 = vld [vmem:[%s4 + $0x90] sm:$0xff]
  %v107 = vld [vmem:[%s4 + $0x98] sm:$0xff]
  %v108 = vld [vmem:[%s4 + $0xa0] sm:$0xff]
  %v109 = vld [vmem:[%s4 + $0xa8] sm:$0xff]
  %v110 = vld [vmem:[%s4 + $0xb0] sm:$0xff]
  %v111 = vld [vmem:[%s4 + $0xb8] sm:$0xff]
  %v112 = vld [vmem:[%s4 + $0xc0] sm:$0xff]
  %v113 = vld [vmem:[%s4 + $0xc8] sm:$0xff]
  %v114 = vld [vmem:[%s4 + $0xd0] sm:$0xff]
  %v115 = vld [vmem:[%s4 + $0xd8] sm:$0xff]
  %v116 = vld [vmem:[%s4 + $0xe0] sm:$0xff]
  %v117 = vld [vmem:[%s4 + $0xe8] sm:$0xff]
  %v118 = vld [vmem:[%s4 + $0xf0] sm:$0xff]
  %v119 = vld [vmem:[%s4 + $0xf8] sm:$0xff]
  %v120 = vld [vmem:[%s5] sm:$0xff]
  %v122 = vperm.slane %v120, 0
  %v123 = vperm.slane %v120, 1
  %v124 = vperm.slane %v120, 2
  %v125 = vperm.slane %v120, 3
  %v126 = vperm.slane %v120, 4
  %v127 = vperm.slane %v120, 5
  %v128 = vperm.slane %v120, 6
  %v129 = vperm.slane %v120, 7
  %v170 = vunpack.c.l.b16 %v88
  %v171 = vunpack.c.h.b16 %v88
  %v172 = vunpack.c.l.b16 %v89
  %v173 = vunpack.c.h.b16 %v89
  %v174 = vunpack.c.l.b16 %v90
  %v175 = vunpack.c.h.b16 %v90
  %v176 = vunpack.c.l.b16 %v91
  %v177 = vunpack.c.h.b16 %v91
  %v178 = vunpack.c.l.b16 %v92
  %v179 = vunpack.c.h.b16 %v92
  %v180 = vunpack.c.l.b16 %v93
  %v181 = vunpack.c.h.b16 %v93
  %v182 = vunpack.c.l.b16 %v94
  %v183 = vunpack.c.h.b16 %v94
  %v184 = vunpack.c.l.b16 %v95
  %v185 = vunpack.c.h.b16 %v95
  %v186 = vunpack.c.l.b16 %v96
  %v187 = vunpack.c.h.b16 %v96
  %v188 = vunpack.c.l.b16 %v97
  %v189 = vunpack.c.h.b16 %v97
  %v190 = vunpack.c.l.b16 %v98
  %v191 = vunpack.c.h.b16 %v98
  %v192 = vunpack.c.l.b16 %v99
  %v193 = vunpack.c.h.b16 %v99
  %v194 = vunpack.c.l.b16 %v100
  %v195 = vunpack.c.h.b16 %v100
  %v196 = vunpack.c.l.b16 %v101
  %v197 = vunpack.c.h.b16 %v101
  %v198 = vunpack.c.l.b16 %v102
  %v199 = vunpack.c.h.b16 %v102
  %v200 = vunpack.c.l.b16 %v103
  %v201 = vunpack.c.h.b16 %v103
  %v202 = vunpack.c.l.b16 %v104
  %v203 = vunpack.c.h.b16 %v104
  %v204 = vunpack.c.l.b16 %v105
  %v205 = vunpack.c.h.b16 %v105
  %v206 = vunpack.c.l.b16 %v106
  %v207 = vunpack.c.h.b16 %v106
  %v208 = vunpack.c.l.b16 %v107
  %v209 = vunpack.c.h.b16 %v107
  %v210 = vunpack.c.l.b16 %v108
  %v211 = vunpack.c.h.b16 %v108
  %v212 = vunpack.c.l.b16 %v109
  %v213 = vunpack.c.h.b16 %v109
  %v214 = vunpack.c.l.b16 %v110
  %v215 = vunpack.c.h.b16 %v110
  %v216 = vunpack.c.l.b16 %v111
  %v217 = vunpack.c.h.b16 %v111
  %v218 = vunpack.c.l.b16 %v112
  %v219 = vunpack.c.h.b16 %v112
  %v220 = vunpack.c.l.b16 %v113
  %v221 = vunpack.c.h.b16 %v113
  %v222 = vunpack.c.l.b16 %v114
  %v223 = vunpack.c.h.b16 %v114
  %v224 = vunpack.c.l.b16 %v115
  %v225 = vunpack.c.h.b16 %v115
  %v226 = vunpack.c.l.b16 %v116
  %v227 = vunpack.c.h.b16 %v116
  %v228 = vunpack.c.l.b16 %v117
  %v229 = vunpack.c.h.b16 %v117
  %v230 = vunpack.c.l.b16 %v118
  %v231 = vunpack.c.h.b16 %v118
  %v232 = vunpack.c.l.b16 %v119
  %v233 = vunpack.c.h.b16 %v119
  %v234 = vpack.c.b16 %v178, %v170
  %v235 = vpack.c.b16 %v179, %v171
  %v236 = vpack.c.b16 %v180, %v172
  %v237 = vpack.c.b16 %v181, %v173
  %v238 = vpack.c.b16 %v182, %v174
  %v239 = vpack.c.b16 %v183, %v175
  %v240 = vpack.c.b16 %v184, %v176
  %v241 = vpack.c.b16 %v185, %v177
  %v242 = vpack.c.b16 %v194, %v186
  %v243 = vpack.c.b16 %v195, %v187
  %v244 = vpack.c.b16 %v196, %v188
  %v245 = vpack.c.b16 %v197, %v189
  %v246 = vpack.c.b16 %v198, %v190
  %v247 = vpack.c.b16 %v199, %v191
  %v248 = vpack.c.b16 %v200, %v192
  %v249 = vpack.c.b16 %v201, %v193
  %v250 = vpack.c.b16 %v210, %v202
  %v251 = vpack.c.b16 %v211, %v203
  %v252 = vpack.c.b16 %v212, %v204
  %v253 = vpack.c.b16 %v213, %v205
  %v254 = vpack.c.b16 %v214, %v206
  %v255 = vpack.c.b16 %v215, %v207
  %v256 = vpack.c.b16 %v216, %v208
  %v257 = vpack.c.b16 %v217, %v209
  %v258 = vpack.c.b16 %v226, %v218
  %v259 = vpack.c.b16 %v227, %v219
  %v260 = vpack.c.b16 %v228, %v220
  %v261 = vpack.c.b16 %v229, %v221
  %v262 = vpack.c.b16 %v230, %v222
  %v263 = vpack.c.b16 %v231, %v223
  %v264 = vpack.c.b16 %v232, %v224
  %v265 = vpack.c.b16 %v233, %v225
  %vm298 = vcmask 523264
  %v300 = vsel %vm298, %v87, 0
  %302 = vmatpush.bf16.msra.mxu0 0
  %303 = vmatpush.bf16.msra.mxu0 0
  %304 = vmatpush.bf16.msra.mxu0 0
  %305 = vmatpush.bf16.msra.mxu0 0
  %306 = vmatpush.bf16.msra.mxu0 %v258
  %307 = vmatpush.bf16.msra.mxu0 %v250
  %308 = vmatpush.bf16.msra.mxu0 %v242
  %309 = vmatpush.bf16.msra.mxu0 %v234
  %310 = vmatmul.bf16.gmra.mxu0 %v300
  %v311 = vpop.f32.mrf.mxu0
  %v312 = vadd.f32 %v122, %v311
  %v313 = vpop.f32.mrf.mxu0
  %v314 = vadd.f32 %v122, %v313
  %315 = vdwg.mxu0
  %316 = vmatpush.bf16.msra.mxu0 0
  %317 = vmatpush.bf16.msra.mxu0 0
  %318 = vmatpush.bf16.msra.mxu0 0
  %319 = vmatpush.bf16.msra.mxu0 0
  %320 = vmatpush.bf16.msra.mxu0 %v259
  %321 = vmatpush.bf16.msra.mxu0 %v251
  %322 = vmatpush.bf16.msra.mxu0 %v243
  %323 = vmatpush.bf16.msra.mxu0 %v235
  %324 = vmatmul.bf16.gmra.mxu0 %v300
  %v325 = vpop.f32.mrf.mxu0
  %v326 = vadd.f32 %v123, %v325
  %v327 = vpop.f32.mrf.mxu0
  %v328 = vadd.f32 %v123, %v327
  %329 = vdwg.mxu0
  %330 = vmatpush.bf16.msra.mxu0 0
  %331 = vmatpush.bf16.msra.mxu0 0
  %332 = vmatpush.bf16.msra.mxu0 0
  %333 = vmatpush.bf16.msra.mxu0 0
  %334 = vmatpush.bf16.msra.mxu0 %v260
  %335 = vmatpush.bf16.msra.mxu0 %v252
  %336 = vmatpush.bf16.msra.mxu0 %v244
  %337 = vmatpush.bf16.msra.mxu0 %v236
  %338 = vmatmul.bf16.gmra.mxu0 %v300
  %v339 = vpop.f32.mrf.mxu0
  %v340 = vadd.f32 %v124, %v339
  %v341 = vpop.f32.mrf.mxu0
  %v342 = vadd.f32 %v124, %v341
  %343 = vdwg.mxu0
  %344 = vmatpush.bf16.msra.mxu0 0
  %345 = vmatpush.bf16.msra.mxu0 0
  %346 = vmatpush.bf16.msra.mxu0 0
  %347 = vmatpush.bf16.msra.mxu0 0
  %348 = vmatpush.bf16.msra.mxu0 %v261
  %349 = vmatpush.bf16.msra.mxu0 %v253
  %350 = vmatpush.bf16.msra.mxu0 %v245
  %351 = vmatpush.bf16.msra.mxu0 %v237
  %352 = vmatmul.bf16.gmra.mxu0 %v300
  %v353 = vpop.f32.mrf.mxu0
  %v354 = vadd.f32 %v125, %v353
  %v355 = vpop.f32.mrf.mxu0
  %v356 = vadd.f32 %v125, %v355
  %357 = vdwg.mxu0
  %358 = vmatpush.bf16.msra.mxu0 0
  %359 = vmatpush.bf16.msra.mxu0 0
  %360 = vmatpush.bf16.msra.mxu0 0
  %361 = vmatpush.bf16.msra.mxu0 0
  %362 = vmatpush.bf16.msra.mxu0 %v262
  %363 = vmatpush.bf16.msra.mxu0 %v254
  %364 = vmatpush.bf16.msra.mxu0 %v246
  %365 = vmatpush.bf16.msra.mxu0 %v238
  %366 = vmatmul.bf16.gmra.mxu0 %v300
  %v367 = vpop.f32.mrf.mxu0
  %v368 = vadd.f32 %v126, %v367
  %v369 = vpop.f32.mrf.mxu0
  %v370 = vadd.f32 %v126, %v369
  %371 = vdwg.mxu0
  %372 = vmatpush.bf16.msra.mxu0 0
  %373 = vmatpush.bf16.msra.mxu0 0
  %374 = vmatpush.bf16.msra.mxu0 0
  %375 = vmatpush.bf16.msra.mxu0 0
  %376 = vmatpush.bf16.msra.mxu0 %v263
  %377 = vmatpush.bf16.msra.mxu0 %v255
  %378 = vmatpush.bf16.msra.mxu0 %v247
  %379 = vmatpush.bf16.msra.mxu0 %v239
  %380 = vmatmul.bf16.gmra.mxu0 %v300
  %v381 = vpop.f32.mrf.mxu0
  %v382 = vadd.f32 %v127, %v381
  %v383 = vpop.f32.mrf.mxu0
  %v384 = vadd.f32 %v127, %v383
  %385 = vdwg.mxu0
  %386 = vmatpush.bf16.msra.mxu0 0
  %387 = vmatpush.bf16.msra.mxu0 0
  %388 = vmatpush.bf16.msra.mxu0 0
  %389 = vmatpush.bf16.msra.mxu0 0
  %390 = vmatpush.bf16.msra.mxu0 %v264
  %391 = vmatpush.bf16.msra.mxu0 %v256
  %392 = vmatpush.bf16.msra.mxu0 %v248
  %393 = vmatpush.bf16.msra.mxu0 %v240
  %394 = vmatmul.bf16.gmra.mxu0 %v300
  %v395 = vpop.f32.mrf.mxu0
  %v396 = vadd.f32 %v128, %v395
  %v397 = vpop.f32.mrf.mxu0
  %v398 = vadd.f32 %v128, %v397
  %399 = vdwg.mxu0
  %400 = vmatpush.bf16.msra.mxu0 0
  %401 = vmatpush.bf16.msra.mxu0 0
  %402 = vmatpush.bf16.msra.mxu0 0
  %403 = vmatpush.bf16.msra.mxu0 0
  %404 = vmatpush.bf16.msra.mxu0 %v265
  %405 = vmatpush.bf16.msra.mxu0 %v257
  %406 = vmatpush.bf16.msra.mxu0 %v249
  %407 = vmatpush.bf16.msra.mxu0 %v241
  %408 = vmatmul.bf16.gmra.mxu0 %v300
  %v409 = vpop.f32.mrf.mxu0
  %v410 = vadd.f32 %v129, %v409
  %v411 = vpop.f32.mrf.mxu0
  %v412 = vadd.f32 %v129, %v411
  %413 = vdwg.mxu0
  %v414 = vtanh.pop %v312
  %v415 = vtanh.pop %v326
  %v416 = vtanh.pop %v340
  %v417 = vtanh.pop %v354
  %v418 = vtanh.pop %v368
  %v419 = vtanh.pop %v382
  %v420 = vtanh.pop %v396
  %v421 = vtanh.pop %v410
  %v422 = vtanh.pop %v314
  %v423 = vtanh.pop %v328
  %v424 = vtanh.pop %v342
  %v425 = vtanh.pop %v356
  %v426 = vtanh.pop %v370
  %v427 = vtanh.pop %v384
  %v428 = vtanh.pop %v398
  %v429 = vtanh.pop %v412
  %430 = vst [vmem:[%s11] sm:$0xff] %v414
  %431 = vst [vmem:[%s11 + $0x8] sm:$0xff] %v415
  %432 = vst [vmem:[%s11 + $0x10] sm:$0xff] %v416
  %433 = vst [vmem:[%s11 + $0x18] sm:$0xff] %v417
  %434 = vst [vmem:[%s11 + $0x20] sm:$0xff] %v418
  %435 = vst [vmem:[%s11 + $0x28] sm:$0xff] %v419
  %436 = vst [vmem:[%s11 + $0x30] sm:$0xff] %v420
  %437 = vst [vmem:[%s11 + $0x38] sm:$0xff] %v421
  %438 = vst [vmem:[%s11 + $0x40] sm:$0xff] %v422
  %439 = vst [vmem:[%s11 + $0x48] sm:$0xff] %v423
  %440 = vst [vmem:[%s11 + $0x50] sm:$0xff] %v424
  %441 = vst [vmem:[%s11 + $0x58] sm:$0xff] %v425
  %442 = vst [vmem:[%s11 + $0x60] sm:$0xff] %v426
  %443 = vst [vmem:[%s11 + $0x68] sm:$0xff] %v427
  %444 = vst [vmem:[%s11 + $0x70] sm:$0xff] %v428
  %445 = vst [vmem:[%s11 + $0x78] sm:$0xff] %v429
  %v446 = vld [vmem:[%s0] sm:$0xff]
  %v447 = vld [vmem:[%s0 + $0x8] sm:$0xff]
  %v448 = vld [vmem:[%s0 + $0x10] sm:$0xff]
  %v449 = vld [vmem:[%s0 + $0x18] sm:$0xff]
  %v450 = vld [vmem:[%s0 + $0x20] sm:$0xff]
  %v451 = vld [vmem:[%s0 + $0x28] sm:$0xff]
  %v452 = vld [vmem:[%s0 + $0x30] sm:$0xff]
  %v453 = vld [vmem:[%s0 + $0x38] sm:$0xff]
  %v454 = vpack.c.bf16 %v415, %v414
  %v455 = vpack.c.bf16 %v417, %v416
  %v456 = vpack.c.bf16 %v419, %v418
  %v457 = vpack.c.bf16 %v421, %v420
  %v458 = vpack.c.bf16 %v423, %v422
  %v459 = vpack.c.bf16 %v425, %v424
  %v460 = vpack.c.bf16 %v427, %v426
  %v461 = vpack.c.bf16 %v429, %v428
  %v470 = vunpack.c.l.b16 %v446
  %v471 = vunpack.c.h.b16 %v446
  %v472 = vunpack.c.l.b16 %v447
  %v473 = vunpack.c.h.b16 %v447
  %v474 = vunpack.c.l.b16 %v448
  %v475 = vunpack.c.h.b16 %v448
  %v476 = vunpack.c.l.b16 %v449
  %v477 = vunpack.c.h.b16 %v449
  %v478 = vunpack.c.l.b16 %v450
  %v479 = vunpack.c.h.b16 %v450
  %v480 = vunpack.c.l.b16 %v451
  %v481 = vunpack.c.h.b16 %v451
  %v482 = vunpack.c.l.b16 %v452
  %v483 = vunpack.c.h.b16 %v452
  %v484 = vunpack.c.l.b16 %v453
  %v485 = vunpack.c.h.b16 %v453
  %v486 = vpack.c.b16 %v478, %v470
  %v487 = vpack.c.b16 %v479, %v471
  %v488 = vpack.c.b16 %v480, %v472
  %v489 = vpack.c.b16 %v481, %v473
  %v490 = vpack.c.b16 %v482, %v474
  %v491 = vpack.c.b16 %v483, %v475
  %v492 = vpack.c.b16 %v484, %v476
  %v493 = vpack.c.b16 %v485, %v477
  %v510 = vunpack.c.l.b16 %v454
  %v511 = vunpack.c.h.b16 %v454
  %v512 = vunpack.c.l.b16 %v455
  %v513 = vunpack.c.h.b16 %v455
  %v514 = vunpack.c.l.b16 %v456
  %v515 = vunpack.c.h.b16 %v456
  %v516 = vunpack.c.l.b16 %v457
  %v517 = vunpack.c.h.b16 %v457
  %v518 = vunpack.c.l.b16 %v458
  %v519 = vunpack.c.h.b16 %v458
  %v520 = vunpack.c.l.b16 %v459
  %v521 = vunpack.c.h.b16 %v459
  %v522 = vunpack.c.l.b16 %v460
  %v523 = vunpack.c.h.b16 %v460
  %v524 = vunpack.c.l.b16 %v461
  %v525 = vunpack.c.h.b16 %v461
  %v526 = vpack.c.b16 %v518, %v510
  %v527 = vpack.c.b16 %v519, %v511
  %v528 = vpack.c.b16 %v520, %v512
  %v529 = vpack.c.b16 %v521, %v513
  %v530 = vpack.c.b16 %v522, %v514
  %v531 = vpack.c.b16 %v523, %v515
  %v532 = vpack.c.b16 %v524, %v516
  %v533 = vpack.c.b16 %v525, %v517
  %v542 = vld [vmem:[%s6] sm:$0xf]
  %v543 = vld [vmem:[%s6 + $0x4] sm:$0xf]
  %v544 = vld [vmem:[%s6 + $0x8] sm:$0xf]
  %v545 = vld [vmem:[%s6 + $0xc] sm:$0xf]
  %v546 = vld [vmem:[%s6 + $0x10] sm:$0xf]
  %v547 = vld [vmem:[%s6 + $0x14] sm:$0xf]
  %v548 = vld [vmem:[%s6 + $0x18] sm:$0xf]
  %v549 = vld [vmem:[%s6 + $0x1c] sm:$0xf]
  %v550 = vld [vmem:[%s6 + $0x20] sm:$0xf]
  %v551 = vld [vmem:[%s6 + $0x24] sm:$0xf]
  %v552 = vld [vmem:[%s6 + $0x28] sm:$0xf]
  %v553 = vld [vmem:[%s6 + $0x2c] sm:$0xf]
  %v554 = vld [vmem:[%s6 + $0x30] sm:$0xf]
  %v555 = vld [vmem:[%s6 + $0x34] sm:$0xf]
  %v556 = vld [vmem:[%s6 + $0x38] sm:$0xf]
  %v557 = vld [vmem:[%s6 + $0x3c] sm:$0xf]
  %v558 = vld [vmem:[%s6 + $0x40] sm:$0xf]
  %v559 = vld [vmem:[%s6 + $0x44] sm:$0xf]
  %v560 = vld [vmem:[%s6 + $0x48] sm:$0xf]
  %v561 = vld [vmem:[%s6 + $0x4c] sm:$0xf]
  %v562 = vld [vmem:[%s6 + $0x50] sm:$0xf]
  %v563 = vld [vmem:[%s6 + $0x54] sm:$0xf]
  %v564 = vld [vmem:[%s6 + $0x58] sm:$0xf]
  %v565 = vld [vmem:[%s6 + $0x5c] sm:$0xf]
  %v566 = vld [vmem:[%s6 + $0x60] sm:$0xf]
  %v567 = vld [vmem:[%s6 + $0x64] sm:$0xf]
  %v568 = vld [vmem:[%s6 + $0x68] sm:$0xf]
  %v569 = vld [vmem:[%s6 + $0x6c] sm:$0xf]
  %v570 = vld [vmem:[%s6 + $0x70] sm:$0xf]
  %v571 = vld [vmem:[%s6 + $0x74] sm:$0xf]
  %v572 = vld [vmem:[%s6 + $0x78] sm:$0xf]
  %v573 = vld [vmem:[%s6 + $0x7c] sm:$0xf]
  %v574 = vld [vmem:[%s6 + $0x80] sm:$0xf]
  %v575 = vld [vmem:[%s6 + $0x84] sm:$0xf]
  %v576 = vld [vmem:[%s6 + $0x88] sm:$0xf]
  %v577 = vld [vmem:[%s6 + $0x8c] sm:$0xf]
  %v578 = vld [vmem:[%s6 + $0x90] sm:$0xf]
  %v579 = vld [vmem:[%s6 + $0x94] sm:$0xf]
  %v580 = vld [vmem:[%s6 + $0x98] sm:$0xf]
  %v581 = vld [vmem:[%s6 + $0x9c] sm:$0xf]
  %v582 = vld [vmem:[%s6 + $0xa0] sm:$0xf]
  %v583 = vld [vmem:[%s6 + $0xa4] sm:$0xf]
  %v584 = vld [vmem:[%s6 + $0xa8] sm:$0xf]
  %v585 = vld [vmem:[%s6 + $0xac] sm:$0xf]
  %v586 = vld [vmem:[%s6 + $0xb0] sm:$0xf]
  %v587 = vld [vmem:[%s6 + $0xb4] sm:$0xf]
  %v588 = vld [vmem:[%s6 + $0xb8] sm:$0xf]
  %v589 = vld [vmem:[%s6 + $0xbc] sm:$0xf]
  %v590 = vld [vmem:[%s6 + $0xc0] sm:$0xf]
  %v591 = vld [vmem:[%s6 + $0xc4] sm:$0xf]
  %v592 = vld [vmem:[%s6 + $0xc8] sm:$0xf]
  %v593 = vld [vmem:[%s6 + $0xcc] sm:$0xf]
  %v594 = vld [vmem:[%s6 + $0xd0] sm:$0xf]
  %v595 = vld [vmem:[%s6 + $0xd4] sm:$0xf]
  %v596 = vld [vmem:[%s6 + $0xd8] sm:$0xf]
  %v597 = vld [vmem:[%s6 + $0xdc] sm:$0xf]
  %v598 = vld [vmem:[%s6 + $0xe0] sm:$0xf]
  %v599 = vld [vmem:[%s6 + $0xe4] sm:$0xf]
  %v600 = vld [vmem:[%s6 + $0xe8] sm:$0xf]
  %v601 = vld [vmem:[%s6 + $0xec] sm:$0xf]
  %v602 = vld [vmem:[%s6 + $0xf0] sm:$0xf]
  %v603 = vld [vmem:[%s6 + $0xf4] sm:$0xf]
  %v604 = vld [vmem:[%s6 + $0xf8] sm:$0xf]
  %v605 = vld [vmem:[%s6 + $0xfc] sm:$0xf]
  %v606 = vld [vmem:[%s6 + $0x100] sm:$0xf]
  %v607 = vld [vmem:[%s6 + $0x104] sm:$0xf]
  %v608 = vld [vmem:[%s6 + $0x108] sm:$0xf]
  %v609 = vld [vmem:[%s6 + $0x10c] sm:$0xf]
  %v610 = vld [vmem:[%s6 + $0x110] sm:$0xf]
  %v611 = vld [vmem:[%s6 + $0x114] sm:$0xf]
  %v612 = vld [vmem:[%s6 + $0x118] sm:$0xf]
  %v613 = vld [vmem:[%s6 + $0x11c] sm:$0xf]
  %v614 = vld [vmem:[%s6 + $0x120] sm:$0xf]
  %v615 = vld [vmem:[%s6 + $0x124] sm:$0xf]
  %v616 = vld [vmem:[%s6 + $0x128] sm:$0xf]
  %v617 = vld [vmem:[%s6 + $0x12c] sm:$0xf]
  %v618 = vld [vmem:[%s6 + $0x130] sm:$0xf]
  %v619 = vld [vmem:[%s6 + $0x134] sm:$0xf]
  %v620 = vld [vmem:[%s6 + $0x138] sm:$0xf]
  %v621 = vld [vmem:[%s6 + $0x13c] sm:$0xf]
  %v622 = vld [vmem:[%s6 + $0x140] sm:$0xf]
  %v623 = vld [vmem:[%s6 + $0x144] sm:$0xf]
  %v624 = vld [vmem:[%s6 + $0x148] sm:$0xf]
  %v625 = vld [vmem:[%s6 + $0x14c] sm:$0xf]
  %v626 = vld [vmem:[%s6 + $0x150] sm:$0xf]
  %v627 = vld [vmem:[%s6 + $0x154] sm:$0xf]
  %v628 = vld [vmem:[%s6 + $0x158] sm:$0xf]
  %v629 = vld [vmem:[%s6 + $0x15c] sm:$0xf]
  %v630 = vld [vmem:[%s6 + $0x160] sm:$0xf]
  %v631 = vld [vmem:[%s6 + $0x164] sm:$0xf]
  %v632 = vld [vmem:[%s6 + $0x168] sm:$0xf]
  %v633 = vld [vmem:[%s6 + $0x16c] sm:$0xf]
  %v634 = vld [vmem:[%s6 + $0x170] sm:$0xf]
  %v635 = vld [vmem:[%s6 + $0x174] sm:$0xf]
  %v636 = vld [vmem:[%s6 + $0x178] sm:$0xf]
  %v637 = vld [vmem:[%s6 + $0x17c] sm:$0xf]
  %v638 = vld [vmem:[%s6 + $0x180] sm:$0xf]
  %v639 = vld [vmem:[%s6 + $0x184] sm:$0xf]
  %v640 = vld [vmem:[%s6 + $0x188] sm:$0xf]
  %v641 = vld [vmem:[%s6 + $0x18c] sm:$0xf]
  %v642 = vld [vmem:[%s6 + $0x190] sm:$0xf]
  %v643 = vld [vmem:[%s6 + $0x194] sm:$0xf]
  %v644 = vld [vmem:[%s6 + $0x198] sm:$0xf]
  %v645 = vld [vmem:[%s6 + $0x19c] sm:$0xf]
  %v646 = vld [vmem:[%s6 + $0x1a0] sm:$0xf]
  %v647 = vld [vmem:[%s6 + $0x1a4] sm:$0xf]
  %v648 = vld [vmem:[%s6 + $0x1a8] sm:$0xf]
  %v649 = vld [vmem:[%s6 + $0x1ac] sm:$0xf]
  %v650 = vld [vmem:[%s6 + $0x1b0] sm:$0xf]
  %v651 = vld [vmem:[%s6 + $0x1b4] sm:$0xf]
  %v652 = vld [vmem:[%s6 + $0x1b8] sm:$0xf]
  %v653 = vld [vmem:[%s6 + $0x1bc] sm:$0xf]
  %v654 = vld [vmem:[%s6 + $0x1c0] sm:$0xf]
  %v655 = vld [vmem:[%s6 + $0x1c4] sm:$0xf]
  %v656 = vld [vmem:[%s6 + $0x1c8] sm:$0xf]
  %v657 = vld [vmem:[%s6 + $0x1cc] sm:$0xf]
  %v658 = vld [vmem:[%s6 + $0x1d0] sm:$0xf]
  %v659 = vld [vmem:[%s6 + $0x1d4] sm:$0xf]
  %v660 = vld [vmem:[%s6 + $0x1d8] sm:$0xf]
  %v661 = vld [vmem:[%s6 + $0x1dc] sm:$0xf]
  %v662 = vld [vmem:[%s6 + $0x1e0] sm:$0xf]
  %v663 = vld [vmem:[%s6 + $0x1e4] sm:$0xf]
  %v664 = vld [vmem:[%s6 + $0x1e8] sm:$0xf]
  %v665 = vld [vmem:[%s6 + $0x1ec] sm:$0xf]
  %v666 = vld [vmem:[%s6 + $0x1f0] sm:$0xf]
  %v667 = vld [vmem:[%s6 + $0x1f4] sm:$0xf]
  %v668 = vld [vmem:[%s6 + $0x1f8] sm:$0xf]
  %v669 = vld [vmem:[%s6 + $0x1fc] sm:$0xf]
  %v670 = vld [vmem:[%s7] sm:$0x1]
  %v672 = vperm.slane %v670, 0
  %v802 = vunpack.c.l.b16 %v542
  %v803 = vunpack.c.l.b16 %v543
  %v804 = vunpack.c.l.b16 %v544
  %v805 = vunpack.c.l.b16 %v545
  %v806 = vunpack.c.l.b16 %v546
  %v807 = vunpack.c.l.b16 %v547
  %v808 = vunpack.c.l.b16 %v548
  %v809 = vunpack.c.l.b16 %v549
  %v810 = vunpack.c.l.b16 %v550
  %v811 = vunpack.c.l.b16 %v551
  %v812 = vunpack.c.l.b16 %v552
  %v813 = vunpack.c.l.b16 %v553
  %v814 = vunpack.c.l.b16 %v554
  %v815 = vunpack.c.l.b16 %v555
  %v816 = vunpack.c.l.b16 %v556
  %v817 = vunpack.c.l.b16 %v557
  %v818 = vunpack.c.l.b16 %v558
  %v819 = vunpack.c.l.b16 %v559
  %v820 = vunpack.c.l.b16 %v560
  %v821 = vunpack.c.l.b16 %v561
  %v822 = vunpack.c.l.b16 %v562
  %v823 = vunpack.c.l.b16 %v563
  %v824 = vunpack.c.l.b16 %v564
  %v825 = vunpack.c.l.b16 %v565
  %v826 = vunpack.c.l.b16 %v566
  %v827 = vunpack.c.l.b16 %v567
  %v828 = vunpack.c.l.b16 %v568
  %v829 = vunpack.c.l.b16 %v569
  %v830 = vunpack.c.l.b16 %v570
  %v831 = vunpack.c.l.b16 %v571
  %v832 = vunpack.c.l.b16 %v572
  %v833 = vunpack.c.l.b16 %v573
  %v834 = vunpack.c.l.b16 %v574
  %v835 = vunpack.c.l.b16 %v575
  %v836 = vunpack.c.l.b16 %v576
  %v837 = vunpack.c.l.b16 %v577
  %v838 = vunpack.c.l.b16 %v578
  %v839 = vunpack.c.l.b16 %v579
  %v840 = vunpack.c.l.b16 %v580
  %v841 = vunpack.c.l.b16 %v581
  %v842 = vunpack.c.l.b16 %v582
  %v843 = vunpack.c.l.b16 %v583
  %v844 = vunpack.c.l.b16 %v584
  %v845 = vunpack.c.l.b16 %v585
  %v846 = vunpack.c.l.b16 %v586
  %v847 = vunpack.c.l.b16 %v587
  %v848 = vunpack.c.l.b16 %v588
  %v849 = vunpack.c.l.b16 %v589
  %v850 = vunpack.c.l.b16 %v590
  %v851 = vunpack.c.l.b16 %v591
  %v852 = vunpack.c.l.b16 %v592
  %v853 = vunpack.c.l.b16 %v593
  %v854 = vunpack.c.l.b16 %v594
  %v855 = vunpack.c.l.b16 %v595
  %v856 = vunpack.c.l.b16 %v596
  %v857 = vunpack.c.l.b16 %v597
  %v858 = vunpack.c.l.b16 %v598
  %v859 = vunpack.c.l.b16 %v599
  %v860 = vunpack.c.l.b16 %v600
  %v861 = vunpack.c.l.b16 %v601
  %v862 = vunpack.c.l.b16 %v602
  %v863 = vunpack.c.l.b16 %v603
  %v864 = vunpack.c.l.b16 %v604
  %v865 = vunpack.c.l.b16 %v605
  %v866 = vunpack.c.l.b16 %v606
  %v867 = vunpack.c.l.b16 %v607
  %v868 = vunpack.c.l.b16 %v608
  %v869 = vunpack.c.l.b16 %v609
  %v870 = vunpack.c.l.b16 %v610
  %v871 = vunpack.c.l.b16 %v611
  %v872 = vunpack.c.l.b16 %v612
  %v873 = vunpack.c.l.b16 %v613
  %v874 = vunpack.c.l.b16 %v614
  %v875 = vunpack.c.l.b16 %v615
  %v876 = vunpack.c.l.b16 %v616
  %v877 = vunpack.c.l.b16 %v617
  %v878 = vunpack.c.l.b16 %v618
  %v879 = vunpack.c.l.b16 %v619
  %v880 = vunpack.c.l.b16 %v620
  %v881 = vunpack.c.l.b16 %v621
  %v882 = vunpack.c.l.b16 %v622
  %v883 = vunpack.c.l.b16 %v623
  %v884 = vunpack.c.l.b16 %v624
  %v885 = vunpack.c.l.b16 %v625
  %v886 = vunpack.c.l.b16 %v626
  %v887 = vunpack.c.l.b16 %v627
  %v888 = vunpack.c.l.b16 %v628
  %v889 = vunpack.c.l.b16 %v629
  %v890 = vunpack.c.l.b16 %v630
  %v891 = vunpack.c.l.b16 %v631
  %v892 = vunpack.c.l.b16 %v632
  %v893 = vunpack.c.l.b16 %v633
  %v894 = vunpack.c.l.b16 %v634
  %v895 = vunpack.c.l.b16 %v635
  %v896 = vunpack.c.l.b16 %v636
  %v897 = vunpack.c.l.b16 %v637
  %v898 = vunpack.c.l.b16 %v638
  %v899 = vunpack.c.l.b16 %v639
  %v900 = vunpack.c.l.b16 %v640
  %v901 = vunpack.c.l.b16 %v641
  %v902 = vunpack.c.l.b16 %v642
  %v903 = vunpack.c.l.b16 %v643
  %v904 = vunpack.c.l.b16 %v644
  %v905 = vunpack.c.l.b16 %v645
  %v906 = vunpack.c.l.b16 %v646
  %v907 = vunpack.c.l.b16 %v647
  %v908 = vunpack.c.l.b16 %v648
  %v909 = vunpack.c.l.b16 %v649
  %v910 = vunpack.c.l.b16 %v650
  %v911 = vunpack.c.l.b16 %v651
  %v912 = vunpack.c.l.b16 %v652
  %v913 = vunpack.c.l.b16 %v653
  %v914 = vunpack.c.l.b16 %v654
  %v915 = vunpack.c.l.b16 %v655
  %v916 = vunpack.c.l.b16 %v656
  %v917 = vunpack.c.l.b16 %v657
  %v918 = vunpack.c.l.b16 %v658
  %v919 = vunpack.c.l.b16 %v659
  %v920 = vunpack.c.l.b16 %v660
  %v921 = vunpack.c.l.b16 %v661
  %v922 = vunpack.c.l.b16 %v662
  %v923 = vunpack.c.l.b16 %v663
  %v924 = vunpack.c.l.b16 %v664
  %v925 = vunpack.c.l.b16 %v665
  %v926 = vunpack.c.l.b16 %v666
  %v927 = vunpack.c.l.b16 %v667
  %v928 = vunpack.c.l.b16 %v668
  %v929 = vunpack.c.l.b16 %v669
  %v930 = vpack.c.b16 %v803, %v802
  %v931 = vpack.c.b16 %v805, %v804
  %v932 = vpack.c.b16 %v807, %v806
  %v933 = vpack.c.b16 %v809, %v808
  %v934 = vpack.c.b16 %v811, %v810
  %v935 = vpack.c.b16 %v813, %v812
  %v936 = vpack.c.b16 %v815, %v814
  %v937 = vpack.c.b16 %v817, %v816
  %v938 = vpack.c.b16 %v819, %v818
  %v939 = vpack.c.b16 %v821, %v820
  %v940 = vpack.c.b16 %v823, %v822
  %v941 = vpack.c.b16 %v825, %v824
  %v942 = vpack.c.b16 %v827, %v826
  %v943 = vpack.c.b16 %v829, %v828
  %v944 = vpack.c.b16 %v831, %v830
  %v945 = vpack.c.b16 %v833, %v832
  %v946 = vpack.c.b16 %v835, %v834
  %v947 = vpack.c.b16 %v837, %v836
  %v948 = vpack.c.b16 %v839, %v838
  %v949 = vpack.c.b16 %v841, %v840
  %v950 = vpack.c.b16 %v843, %v842
  %v951 = vpack.c.b16 %v845, %v844
  %v952 = vpack.c.b16 %v847, %v846
  %v953 = vpack.c.b16 %v849, %v848
  %v954 = vpack.c.b16 %v851, %v850
  %v955 = vpack.c.b16 %v853, %v852
  %v956 = vpack.c.b16 %v855, %v854
  %v957 = vpack.c.b16 %v857, %v856
  %v958 = vpack.c.b16 %v859, %v858
  %v959 = vpack.c.b16 %v861, %v860
  %v960 = vpack.c.b16 %v863, %v862
  %v961 = vpack.c.b16 %v865, %v864
  %v962 = vpack.c.b16 %v867, %v866
  %v963 = vpack.c.b16 %v869, %v868
  %v964 = vpack.c.b16 %v871, %v870
  %v965 = vpack.c.b16 %v873, %v872
  %v966 = vpack.c.b16 %v875, %v874
  %v967 = vpack.c.b16 %v877, %v876
  %v968 = vpack.c.b16 %v879, %v878
  %v969 = vpack.c.b16 %v881, %v880
  %v970 = vpack.c.b16 %v883, %v882
  %v971 = vpack.c.b16 %v885, %v884
  %v972 = vpack.c.b16 %v887, %v886
  %v973 = vpack.c.b16 %v889, %v888
  %v974 = vpack.c.b16 %v891, %v890
  %v975 = vpack.c.b16 %v893, %v892
  %v976 = vpack.c.b16 %v895, %v894
  %v977 = vpack.c.b16 %v897, %v896
  %v978 = vpack.c.b16 %v899, %v898
  %v979 = vpack.c.b16 %v901, %v900
  %v980 = vpack.c.b16 %v903, %v902
  %v981 = vpack.c.b16 %v905, %v904
  %v982 = vpack.c.b16 %v907, %v906
  %v983 = vpack.c.b16 %v909, %v908
  %v984 = vpack.c.b16 %v911, %v910
  %v985 = vpack.c.b16 %v913, %v912
  %v986 = vpack.c.b16 %v915, %v914
  %v987 = vpack.c.b16 %v917, %v916
  %v988 = vpack.c.b16 %v919, %v918
  %v989 = vpack.c.b16 %v921, %v920
  %v990 = vpack.c.b16 %v923, %v922
  %v991 = vpack.c.b16 %v925, %v924
  %v992 = vpack.c.b16 %v927, %v926
  %v993 = vpack.c.b16 %v929, %v928
  %1058 = vmatpush.bf16.msra.mxu0 %v937
  %1059 = vmatpush.bf16.msra.mxu0 %v936
  %1060 = vmatpush.bf16.msra.mxu0 %v935
  %1061 = vmatpush.bf16.msra.mxu0 %v934
  %1062 = vmatpush.bf16.msra.mxu0 %v933
  %1063 = vmatpush.bf16.msra.mxu0 %v932
  %1064 = vmatpush.bf16.msra.mxu0 %v931
  %1065 = vmatpush.bf16.msra.mxu0 %v930
  %1066 = vmatmul.bf16.gmra.mxu0 %v486
  %v1067 = vpop.f32.mrf.mxu0
  %v1068 = vadd.f32 %v672, %v1067
  %v1069 = vpop.f32.mrf.mxu0
  %v1070 = vadd.f32 %v672, %v1069
  %1071 = vmatmul.bf16.gmra.mxu0 %v526
  %v1072 = vpop.f32.mrf.mxu0
  %v1073 = vadd.f32 %v672, %v1072
  %v1074 = vpop.f32.mrf.mxu0
  %v1075 = vadd.f32 %v672, %v1074
  %1076 = vdwg.mxu0
  %1077 = vmatpush.bf16.msra.mxu0 %v945
  %1078 = vmatpush.bf16.msra.mxu0 %v944
  %1079 = vmatpush.bf16.msra.mxu0 %v943
  %1080 = vmatpush.bf16.msra.mxu0 %v942
  %1081 = vmatpush.bf16.msra.mxu0 %v941
  %1082 = vmatpush.bf16.msra.mxu0 %v940
  %1083 = vmatpush.bf16.msra.mxu0 %v939
  %1084 = vmatpush.bf16.msra.mxu0 %v938
  %1085 = vmatmul.bf16.gmra.mxu0 %v487
  %v1086 = vpop.f32.mrf.mxu0
  %v1087 = vadd.f32 %v1068, %v1086
  %v1088 = vpop.f32.mrf.mxu0
  %v1089 = vadd.f32 %v1070, %v1088
  %1090 = vmatmul.bf16.gmra.mxu0 %v527
  %v1091 = vpop.f32.mrf.mxu0
  %v1092 = vadd.f32 %v1073, %v1091
  %v1093 = vpop.f32.mrf.mxu0
  %v1094 = vadd.f32 %v1075, %v1093
  %1095 = vdwg.mxu0
  %1096 = vmatpush.bf16.msra.mxu0 %v953
  %1097 = vmatpush.bf16.msra.mxu0 %v952
  %1098 = vmatpush.bf16.msra.mxu0 %v951
  %1099 = vmatpush.bf16.msra.mxu0 %v950
  %1100 = vmatpush.bf16.msra.mxu0 %v949
  %1101 = vmatpush.bf16.msra.mxu0 %v948
  %1102 = vmatpush.bf16.msra.mxu0 %v947
  %1103 = vmatpush.bf16.msra.mxu0 %v946
  %1104 = vmatmul.bf16.gmra.mxu0 %v488
  %v1105 = vpop.f32.mrf.mxu0
  %v1106 = vadd.f32 %v1087, %v1105
  %v1107 = vpop.f32.mrf.mxu0
  %v1108 = vadd.f32 %v1089, %v1107
  %1109 = vmatmul.bf16.gmra.mxu0 %v528
  %v1110 = vpop.f32.mrf.mxu0
  %v1111 = vadd.f32 %v1092, %v1110
  %v1112 = vpop.f32.mrf.mxu0
  %v1113 = vadd.f32 %v1094, %v1112
  %1114 = vdwg.mxu0
  %1115 = vmatpush.bf16.msra.mxu0 %v961
  %1116 = vmatpush.bf16.msra.mxu0 %v960
  %1117 = vmatpush.bf16.msra.mxu0 %v959
  %1118 = vmatpush.bf16.msra.mxu0 %v958
  %1119 = vmatpush.bf16.msra.mxu0 %v957
  %1120 = vmatpush.bf16.msra.mxu0 %v956
  %1121 = vmatpush.bf16.msra.mxu0 %v955
  %1122 = vmatpush.bf16.msra.mxu0 %v954
  %1123 = vmatmul.bf16.gmra.mxu0 %v489
  %v1124 = vpop.f32.mrf.mxu0
  %v1125 = vadd.f32 %v1106, %v1124
  %v1126 = vpop.f32.mrf.mxu0
  %v1127 = vadd.f32 %v1108, %v1126
  %1128 = vmatmul.bf16.gmra.mxu0 %v529
  %v1129 = vpop.f32.mrf.mxu0
  %v1130 = vadd.f32 %v1111, %v1129
  %v1131 = vpop.f32.mrf.mxu0
  %v1132 = vadd.f32 %v1113, %v1131
  %1133 = vdwg.mxu0
  %1134 = vmatpush.bf16.msra.mxu0 %v969
  %1135 = vmatpush.bf16.msra.mxu0 %v968
  %1136 = vmatpush.bf16.msra.mxu0 %v967
  %1137 = vmatpush.bf16.msra.mxu0 %v966
  %1138 = vmatpush.bf16.msra.mxu0 %v965
  %1139 = vmatpush.bf16.msra.mxu0 %v964
  %1140 = vmatpush.bf16.msra.mxu0 %v963
  %1141 = vmatpush.bf16.msra.mxu0 %v962
  %1142 = vmatmul.bf16.gmra.mxu0 %v490
  %v1143 = vpop.f32.mrf.mxu0
  %v1144 = vadd.f32 %v1125, %v1143
  %v1145 = vpop.f32.mrf.mxu0
  %v1146 = vadd.f32 %v1127, %v1145
  %1147 = vmatmul.bf16.gmra.mxu0 %v530
  %v1148 = vpop.f32.mrf.mxu0
  %v1149 = vadd.f32 %v1130, %v1148
  %v1150 = vpop.f32.mrf.mxu0
  %v1151 = vadd.f32 %v1132, %v1150
  %1152 = vdwg.mxu0
  %1153 = vmatpush.bf16.msra.mxu0 %v977
  %1154 = vmatpush.bf16.msra.mxu0 %v976
  %1155 = vmatpush.bf16.msra.mxu0 %v975
  %1156 = vmatpush.bf16.msra.mxu0 %v974
  %1157 = vmatpush.bf16.msra.mxu0 %v973
  %1158 = vmatpush.bf16.msra.mxu0 %v972
  %1159 = vmatpush.bf16.msra.mxu0 %v971
  %1160 = vmatpush.bf16.msra.mxu0 %v970
  %1161 = vmatmul.bf16.gmra.mxu0 %v491
  %v1162 = vpop.f32.mrf.mxu0
  %v1163 = vadd.f32 %v1144, %v1162
  %v1164 = vpop.f32.mrf.mxu0
  %v1165 = vadd.f32 %v1146, %v1164
  %1166 = vmatmul.bf16.gmra.mxu0 %v531
  %v1167 = vpop.f32.mrf.mxu0
  %v1168 = vadd.f32 %v1149, %v1167
  %v1169 = vpop.f32.mrf.mxu0
  %v1170 = vadd.f32 %v1151, %v1169
  %1171 = vdwg.mxu0
  %1172 = vmatpush.bf16.msra.mxu0 %v985
  %1173 = vmatpush.bf16.msra.mxu0 %v984
  %1174 = vmatpush.bf16.msra.mxu0 %v983
  %1175 = vmatpush.bf16.msra.mxu0 %v982
  %1176 = vmatpush.bf16.msra.mxu0 %v981
  %1177 = vmatpush.bf16.msra.mxu0 %v980
  %1178 = vmatpush.bf16.msra.mxu0 %v979
  %1179 = vmatpush.bf16.msra.mxu0 %v978
  %1180 = vmatmul.bf16.gmra.mxu0 %v492
  %v1181 = vpop.f32.mrf.mxu0
  %v1182 = vadd.f32 %v1163, %v1181
  %v1183 = vpop.f32.mrf.mxu0
  %v1184 = vadd.f32 %v1165, %v1183
  %1185 = vmatmul.bf16.gmra.mxu0 %v532
  %v1186 = vpop.f32.mrf.mxu0
  %v1187 = vadd.f32 %v1168, %v1186
  %v1188 = vpop.f32.mrf.mxu0
  %v1189 = vadd.f32 %v1170, %v1188
  %1190 = vdwg.mxu0
  %1191 = vmatpush.bf16.msra.mxu0 %v993
  %1192 = vmatpush.bf16.msra.mxu0 %v992
  %1193 = vmatpush.bf16.msra.mxu0 %v991
  %1194 = vmatpush.bf16.msra.mxu0 %v990
  %1195 = vmatpush.bf16.msra.mxu0 %v989
  %1196 = vmatpush.bf16.msra.mxu0 %v988
  %1197 = vmatpush.bf16.msra.mxu0 %v987
  %1198 = vmatpush.bf16.msra.mxu0 %v986
  %1199 = vmatmul.bf16.gmra.mxu0 %v493
  %v1200 = vpop.f32.mrf.mxu0
  %v1201 = vadd.f32 %v1182, %v1200
  %v1202 = vpop.f32.mrf.mxu0
  %v1203 = vadd.f32 %v1184, %v1202
  %1204 = vmatmul.bf16.gmra.mxu0 %v533
  %v1205 = vpop.f32.mrf.mxu0
  %v1206 = vadd.f32 %v1187, %v1205
  %v1207 = vpop.f32.mrf.mxu0
  %v1208 = vadd.f32 %v1189, %v1207
  %1209 = vdwg.mxu0
  %vm1210 = vcmp.gt.f32.partialorder %v1201, 0.0
  %vm1211 = vcmp.gt.f32.partialorder %v1203, 0.0
  %vm1212 = vcmp.gt.f32.partialorder %v1206, 0.0
  %vm1213 = vcmp.gt.f32.partialorder %v1208, 0.0
  %v1214 = vmul.f32 %v1201, 0.2
  %v1215 = vmul.f32 %v1203, 0.2
  %v1216 = vmul.f32 %v1206, 0.2
  %v1217 = vmul.f32 %v1208, 0.2
  %v1218 = vsel %vm1210, %v1201, %v1214
  %v1219 = vsel %vm1211, %v1203, %v1215
  %v1220 = vsel %vm1212, %v1206, %v1216
  %v1221 = vsel %vm1213, %v1208, %v1217
  %v1222 = vld [vmem:[%s8] sm:$0x1]
  %v1224 = vperm.slane %v1222, 0
  %v1226 = vmul.f32 %v1218, %v1224
  %v1227 = vmul.f32 %v1219, %v1224
  %v1228 = vmul.f32 %v1220, %v1224
  %v1229 = vmul.f32 %v1221, %v1224
  %v1230 = vsel %vm298, %v1226, 0.0
  %1231 = vadd.xlane.f32.xlu0 %v1230
  %v1232 = vpop.xlane.xlu0 %1231
  %v1233 = vsel %vm298, %v1227, 0.0
  %1234 = vadd.xlane.f32.xlu0 %v1233
  %v1235 = vpop.xlane.xlu0 %1234
  %v1236 = vsel %vm298, %v1228, 0.0
  %1237 = vadd.xlane.f32.xlu0 %v1236
  %v1238 = vpop.xlane.xlu0 %1237
  %v1239 = vsel %vm298, %v1229, 0.0
  %1240 = vadd.xlane.f32.xlu0 %v1239
  %v1241 = vpop.xlane.xlu0 %1240
  %v1242 = vld [vmem:[#allocation2] sm:$0x1]
  %v1244 = vperm.slane %v1242, 0
  %v1246 = vadd.f32 %v1232, %v1244
  %v1247 = vadd.f32 %v1235, %v1244
  %v1248 = vadd.f32 %v1238, %v1244
  %v1249 = vadd.f32 %v1241, %v1244
  %v1250 = vsub.f32 0.0, %v1246
  %v1251 = vsub.f32 0.0, %v1247
  %v1252 = vsub.f32 0.0, %v1248
  %v1253 = vsub.f32 0.0, %v1249
  %v1254 = vmul.f32 %v1250, 1.442695
  %v1255 = vpow.pop %v1254
  %v1256 = vmul.f32 %v1251, 1.442695
  %v1257 = vpow.pop %v1256
  %v1258 = vmul.f32 %v1252, 1.442695
  %v1259 = vpow.pop %v1258
  %v1260 = vmul.f32 %v1253, 1.442695
  %v1261 = vpow.pop %v1260
  %v1262 = vadd.f32 %v1255, 1.0
  %v1263 = vadd.f32 %v1257, 1.0
  %v1264 = vadd.f32 %v1259, 1.0
  %v1265 = vadd.f32 %v1261, 1.0
  %v1266 = vrcp.pop %v1262
  %v1267 = vrcp.pop %v1263
  %v1268 = vrcp.pop %v1264
  %v1269 = vrcp.pop %v1265
  %v1270 = vmin.f32 %v1266, 1.0
  %v1271 = vmin.f32 %v1267, 1.0
  %v1272 = vmin.f32 %v1268, 1.0
  %v1273 = vmin.f32 %v1269, 1.0
  %1275 = vset.pattern.permute.xlu0 0
  %1276 = vperm.xlu0 %1275, %v1270
  %v1277 = vpop.permute.xlu0 %1276
  %1280 = vset.pattern.permute.xlu0 0
  %1281 = vperm.xlu0 %1280, %v1271
  %v1282 = vpop.permute.xlu0 %1281
  %1285 = vset.pattern.permute.xlu0 0
  %1286 = vperm.xlu0 %1285, %v1272
  %v1287 = vpop.permute.xlu0 %1286
  %1290 = vset.pattern.permute.xlu0 0
  %1291 = vperm.xlu0 %1290, %v1273
  %v1292 = vpop.permute.xlu0 %1291
  %1294 = vst [vmem:[%s10] sm:$0xff] %v1277
  %1295 = vst [vmem:[%s10 + $0x8] sm:$0xff] %v1282
  %1296 = vst [vmem:[%s10 + $0x10] sm:$0xff] %v1287
  %1297 = vst [vmem:[%s10 + $0x18] sm:$0xff] %v1292
  // Predicated region
  $region42: #{fwd.1} parent=0 // pred_check
    _
  $region43: #{fwd.1} parent=0 // pred_check_branch
    %1299 = sbr.rel (0) target = $region45
  $region44: #{fwd.1} parent=0 // pred_region
    _
  $region45: #{fwd.1} parent=0 // pred_fallthru
    _
  // Predicated region
  $region46: #{fwd.1} parent=0 // pred_check
    _
  $region47: #{fwd.1} parent=0 // pred_check_branch
    %1301 = sbr.rel (0) target = $region49
  $region48: #{fwd.1} parent=0 // pred_region
    _
  $region49: #{fwd.1} parent=0 // pred_fallthru
    _
  // Predicated region
  $region50: #{fwd.1} parent=0 // pred_check
    _
  $region51: #{fwd.1} parent=0 // pred_check_branch
    %1303 = sbr.rel (0) target = $region53
  $region52: #{fwd.1} parent=0 // pred_region
    _
  $region53: #{fwd.1} parent=0 // pred_fallthru
    _
  // Predicated region
  $region54: #{fwd.1} parent=0 // pred_check
    _
  $region55: #{fwd.1} parent=0 // pred_check_branch
    %1305 = sbr.rel (0) target = $region57
  $region56: #{fwd.1} parent=0 // pred_region
    _
  $region57: #{fwd.1} parent=0 // pred_fallthru
    _

</llo_original>
